<compile_context>
chip_gen: v7x
topology: tpu7x:2x2x1
jax: 0.10.0
libtpu: 0.0.40
codegen_flags: <defaults>
</compile_context>

<pallas_src>
import functools

import jax
import jax.numpy as jnp
import numpy as np
from jax.experimental import pallas as pl
from jax.experimental.pallas import tpu as pltpu

HIDDEN = 128  # fixed by the module: nn.Conv2d(5C, 128, 1)


# ----------------------------------------------------------------------------
# One-time probe: pin down pltpu.roll's direction convention on this backend.
# sign = +1  -> pltpu.roll(x, s) == np.roll(x, s)   (out[j] = in[j - s])
# sign = -1  -> opposite convention                  (out[j] = in[j + s])
# ----------------------------------------------------------------------------
_ROLL_SIGN = None


def _roll_probe_kernel(x_ref, o_ref):
    o_ref[...] = pltpu.roll(x_ref[...], 1, 1)


def _get_roll_sign():
    global _ROLL_SIGN
    if _ROLL_SIGN is None:
        x = np.arange(8 * 128, dtype=np.float32).reshape(8, 128)
        y = pl.pallas_call(
            _roll_probe_kernel,
            out_shape=jax.ShapeDtypeStruct((8, 128), jnp.float32),
        )(jnp.asarray(x))
        _ROLL_SIGN = 1 if np.array_equal(np.asarray(y), np.roll(x, 1, axis=1)) else -1
    return _ROLL_SIGN


def _choose_bt(B, HW, target_lanes=4096):
    """Images per grid step: fatten the lane axis, but keep >=2 steps (v7x TCs)."""
    cap = max(1, target_lanes // HW)
    if B >= 2:
        cap = min(cap, B // 2)
    bt = 1
    for d in range(1, cap + 1):
        if B % d == 0:
            bt = d
    return bt


def _make_kernel(C, H, W, BT, roll_sign):
    N = BT * H * W  # lanes per grid step (BT images side by side)

    def kernel(x_ref, w1_ref, b1_ref, w2_ref, m_ref, out_ref, p_ref):
        # x_ref:   (C, N)        BT images, channels in sublanes, flat spatial in lanes
        # w1_ref:  (HIDDEN, 4C)  bf16, grouped [x+identity, sobel_x, sobel_y, laplace]
        # b1_ref:  (HIDDEN, 1)   f32 first-layer bias (lane-broadcast)
        # w2_ref:  (C, HIDDEN)   bf16 second-layer weight (no bias)
        # m_ref:   (4, N)        f32 masks: [w!=0, w!=W-1, h!=0, h!=H-1]
        # out_ref: (C, N)        x + dx
        # p_ref:   (4C, N)       scratch: stacked percepts [x, sobel_x, sobel_y, laplace]
        x = x_ref[...]                      # center tap == identity percept

        left = m_ref[0:1, :]                # kills dx = -1 wrap (and image/block wrap)
        right = m_ref[1:2, :]               # kills dx = +1 wrap
        top = m_ref[2:3, :]                 # kills dy = -1 wrap
        bot = m_ref[3:4, :]                 # kills dy = +1 wrap

        def tap(dy, dx):
            # value at spatial offset (dy, dx): in-register XLU lane rotation,
            # image/row boundaries zeroed by the precomputed masks.
            shift = (roll_sign * -(dy * W + dx)) % N
            v = pltpu.roll(x, shift, 1)
            m = None
            if dy == -1:
                m = top
            elif dy == 1:
                m = bot
            if dx == -1:
                m = left if m is None else m * left
            elif dx == 1:
                m = right if m is None else m * right
            return v * m if m is not None else v

        tmm = tap(-1, -1)
        tm0 = tap(-1, 0)
        tmp = tap(-1, 1)
        t0m = tap(0, -1)
        t0p = tap(0, 1)
        tpm = tap(1, -1)
        tp0 = tap(1, 0)
        tpp = tap(1, 1)

        # sobel_x: [[1,0,-1],[2,0,-2],[1,0,-1]]   (cross-correlation)
        sx = (tmm - tmp) + 2.0 * (t0m - t0p) + (tpm - tpp)
        # sobel_y: [[1,2,1],[0,0,0],[-1,-2,-1]]
        sy = (tmm + 2.0 * tm0 + tmp) - (tpm + 2.0 * tp0 + tpp)
        # laplace: [[0,1,0],[1,-4,1],[0,1,0]]
        lap = tm0 + t0m + t0p + tp0 - 4.0 * x

        # Stack percepts (identity group folded into the x rows via the weights).
        p_ref[pl.ds(0, C), :] = x
        p_ref[pl.ds(C, C), :] = sx
        p_ref[pl.ds(2 * C, C), :] = sy
        p_ref[pl.ds(3 * C, C), :] = lap

        # update_mlp, transposed: h(128, N) = W1g(128,4C) @ P(4C,N) + b1
        h = jnp.dot(w1_ref[...], p_ref[...].astype(jnp.bfloat16),
                    preferred_element_type=jnp.float32) + b1_ref[...]
        h = jnp.maximum(h, 0.0)
        # dx(C, N) = W2(C,128) @ h(128,N)  -- full K=128 MXU depth
        dx_ = jnp.dot(w2_ref[...], h.astype(jnp.bfloat16),
                      preferred_element_type=jnp.float32)

        out_ref[...] = x + dx_

    return kernel


@functools.partial(jax.jit, static_argnames=("roll_sign",))
def _nca_update_impl(x_nchw, w1, b1, w2, *, roll_sign):
    B, C, H, W = x_nchw.shape
    HW = H * W
    BT = _choose_bt(B, HW)
    G = B // BT
    N = BT * HW

    # Channel-major, lane-dense layout: (B,C,H,W) -> (C, B*HW).  One cheap XLA
    # transpose each way; every block/DMA/store inside the kernel is lane-dense.
    x_cm = jnp.transpose(x_nchw.astype(jnp.float32).reshape(B, C, HW),
                         (1, 0, 2)).reshape(C, B * HW)

    # PyTorch stack channel order is [x_0..x_{C-1}, percept_{4c+m}] with
    # m in {identity, sobel_x, sobel_y, laplace}.  Fold identity percept (== x)
    # into the raw-x weight group -> grouped (HIDDEN, 4C) first-layer weight.
    w1_mat = w1[:, :, 0, 0].astype(jnp.float32)            # (128, 5C)
    raw = w1_mat[:, :C]                                    # (128, C)
    perc = w1_mat[:, C:].reshape(HIDDEN, C, 4)             # (128, C, 4)
    w1g = jnp.concatenate(
        [raw + perc[:, :, 0], perc[:, :, 1], perc[:, :, 2], perc[:, :, 3]],
        axis=1).astype(jnp.bfloat16)                       # (128, 4C) bf16 (MXU native)
    b1_col = b1.reshape(HIDDEN, 1).astype(jnp.float32)     # (128, 1)
    w2_mat = w2[:, :, 0, 0].astype(jnp.bfloat16)           # (C, 128) bf16

    # Boundary masks for the roll-based stencil, tiled BT times along lanes.
    col = jnp.arange(HW, dtype=jnp.int32) % W
    row = jnp.arange(HW, dtype=jnp.int32) // W
    m1 = jnp.stack([col != 0, col != (W - 1), row != 0, row != (H - 1)],
                   axis=0).astype(jnp.float32)             # (4, HW)
    masks = jnp.tile(m1, (1, BT))                          # (4, N)

    kernel = _make_kernel(C, H, W, BT, roll_sign)

    # VMEM budget derived from the actual buffers (+ headroom), not hard-coded.
    buf_bytes = (
        2 * (C * N * 4)                                    # x block, double buffered
        + 2 * (C * N * 4)                                  # out block, double buffered
        + 2 * (HIDDEN * 4 * C * 2 + HIDDEN * 4 + C * HIDDEN * 2 + 4 * N * 4)  # weights+masks
        + (4 * C * N * 4)                                  # percept scratch
        + HIDDEN * N * 4 + HIDDEN * N * 2                  # h (f32) + bf16 copy
    )
    vmem_limit = int(min(max(2 * buf_bytes + (2 << 20), 8 << 20), 40 << 20))

    flops = 2 * B * HW * HIDDEN * (4 * C + C) + 40 * B * C * HW
    bytes_accessed = (4 * 2 * B * C * HW
                      + 2 * (HIDDEN * 4 * C + C * HIDDEN)
                      + 4 * (HIDDEN + 4 * N))

    out_cm = pl.pallas_call(
        kernel,
        out_shape=jax.ShapeDtypeStruct((C, B * HW), jnp.float32),
        grid=(G,),
        in_specs=[
            pl.BlockSpec((C, N), lambda g: (0, g)),            # BT images per step
            pl.BlockSpec((HIDDEN, 4 * C), lambda g: (0, 0)),   # w1g (VMEM resident)
            pl.BlockSpec((HIDDEN, 1), lambda g: (0, 0)),       # b1
            pl.BlockSpec((C, HIDDEN), lambda g: (0, 0)),       # w2
            pl.BlockSpec((4, N), lambda g: (0, 0)),            # boundary masks
        ],
        out_specs=pl.BlockSpec((C, N), lambda g: (0, g)),
        scratch_shapes=[
            pltpu.VMEM((4 * C, N), jnp.float32),               # stacked percepts
        ],
        compiler_params=pltpu.CompilerParams(
            dimension_semantics=("parallel",),                 # batch steps split across TCs
            vmem_limit_bytes=vmem_limit,
        ),
        cost_estimate=pl.CostEstimate(
            flops=int(flops), transcendentals=0, bytes_accessed=int(bytes_accessed)),
    )(x_cm, w1g, b1_col, w2_mat, masks)

    # (C, B*HW) -> (B, C, H, W)
    return jnp.transpose(out_cm.reshape(C, B, HW), (1, 0, 2)).reshape(B, C, H, W)


def nca_update(x_nchw, w1, b1, w2):
    """Matches NCAUpdate.forward. x_nchw: (B,C,H,W); w1:(128,5C,1,1); b1:(128,); w2:(C,128,1,1)."""
    return _nca_update_impl(x_nchw, w1, b1, w2, roll_sign=_get_roll_sign())


# ---------------- pure-JAX reference (emulates the PyTorch module) ----------------
def make_perception_weight(C):
    identity = jnp.zeros((3, 3), jnp.float32).at[1, 1].set(1.0)
    sobel_x = jnp.array([[1, 0, -1], [2, 0, -2], [1, 0, -1]], jnp.float32)
    sobel_y = jnp.array([[1, 2, 1], [0, 0, 0], [-1, -2, -1]], jnp.float32)
    laplace = jnp.array([[0, 1, 0], [1, -4, 1], [0, 1, 0]], jnp.float32)
    k = jnp.stack([identity, sobel_x, sobel_y, laplace], axis=0)[:, None]  # (4,1,3,3)
    return jnp.tile(k, (C, 1, 1, 1))                                       # (4C,1,3,3)


def reference(x, dw, w1, b1, w2):
    C = x.shape[1]
    percept = jax.lax.conv_general_dilated(
        x, dw, (1, 1), ((1, 1), (1, 1)),
        dimension_numbers=('NCHW', 'OIHW', 'NCHW'), feature_group_count=C)
    stack = jnp.concatenate([x, percept], axis=1)
    h = jax.lax.conv_general_dilated(
        stack, w1, (1, 1), 'VALID',
        dimension_numbers=('NCHW', 'OIHW', 'NCHW')) + b1[None, :, None, None]
    h = jnp.maximum(h, 0.0)
    dx = jax.lax.conv_general_dilated(
        h, w2, (1, 1), 'VALID',
        dimension_numbers=('NCHW', 'OIHW', 'NCHW'))
    return x + dx


if __name__ == "__main__":
    B, C, H, W = 2, 4, 16, 16
    key = jax.random.PRNGKey(0)
    k1, k2, k3, k4 = jax.random.split(key, 4)

    x = jax.random.normal(k1, (B, C, H, W), jnp.float32)
    # Deterministic synthetic parameters (shapes from the module's __init__).
    w1 = jax.random.normal(k2, (HIDDEN, 5 * C, 1, 1), jnp.float32) * 0.1
    b1 = jax.random.normal(k3, (HIDDEN,), jnp.float32) * 0.1
    w2 = jax.random.normal(k4, (C, HIDDEN, 1, 1), jnp.float32) * 0.1

    out = jax.block_until_ready(nca_update(x, w1, b1, w2))

    ref = reference(x, make_perception_weight(C), w1, b1, w2)
    # bf16 MXU operands (f32 accumulation) -> tolerance loosened vs the f32 reference.
    np.testing.assert_allclose(np.asarray(out), np.asarray(ref), rtol=4e-2, atol=4e-2)

    print("KERNEL_OK")
</pallas_src>

<mosaic_0001>
module attributes {stable_mosaic.version = 11 : i64} {
  func.func @_roll_probe_kernel(%arg0: memref<8x128xf32, #tpu.memory_space<vmem>>, %arg1: memref<8x128xf32, #tpu.memory_space<vmem>>) attributes {dimension_semantics = [], scalar_prefetch = 0 : i64, scratch_operands = 0 : i64, tpu.core_type = #tpu.core_type<tc>} {
    %c0 = arith.constant 0 : index
    %c0_0 = arith.constant 0 : index
    %0 = vector.load %arg0[%c0, %c0_0] : memref<8x128xf32, #tpu.memory_space<vmem>>, vector<8x128xf32>
    %c1_i32 = arith.constant 1 : i32
    %1 = tpu.dynamic_rotate %0 by %c1_i32 dim 1 : vector<8x128xf32>, i32 -> vector<8x128xf32>
    %c0_1 = arith.constant 0 : index
    %c0_2 = arith.constant 0 : index
    %2 = vector.load %arg1[%c0_1, %c0_2] : memref<8x128xf32, #tpu.memory_space<vmem>>, vector<8x128xf32>
    tpu.vector_store %arg1[%c0_1, %c0_2], %1 {strides = array<i32>} : memref<8x128xf32, #tpu.memory_space<vmem>>, vector<8x128xf32>,
    return
  }
}

</mosaic_0001>

<llo_original>
// kernel: tpu_custom_call.1
$region0: #{tpu_custom_call.1}
  #allocation0 [shape = 'u32[]', space=smem, size = 0x4, offset = 0x4, fixed_abs, tag = 'smem constant byte address 0x4 - core index']
  #allocation1 [shape = 'u32[144,128]{1,0:T(1,128)}', space=vmem, size = 0x12000, scoped, tag = 'internal scratch']
  %s0 = inlined_call_operand.hbm [shape: f32[8,128], index: 0, kind: input, shape index: {}]
  %s1 = inlined_call_operand.hbm [shape: f32[8,128], index: 1, kind: output, shape index: {}]
  %s2 = sld [smem:[#allocation0]]
  $region18: #{tpu_custom_call.1} parent=0
    _
  %s4 = ssub.s32 1, %s2
  %s5 = scalar_select 0, %s4, %s2
  $region1: #{tpu_custom_call.1} parent=0
    #allocation2 [shape = 'u8[4096]{0}', space=vmem, size = 0x1000, scoped, tag = 'input window, operand 0, single buffered']
    #allocation3 [shape = 's32[1]{0}', space=sflag, size = 0x4, scoped, tag = 'scoped memory for tpu_custom_call.1']
    #allocation4 [shape = 's32[1]{0}', space=sflag, size = 0x4, scoped, tag = 'scoped memory for tpu_custom_call.1']
    #allocation5 [shape = 'u8[4096]{0}', space=vmem, size = 0x1000, scoped, tag = 'output window, operand 0, single buffered']
    %6 = vsyncpa [#allocation3], 0
    %7 = vsyncpa [#allocation4], 0
    // Predicated region
    $region2: #{tpu_custom_call.1} parent=1 // pred_check
      _
    $region3: #{tpu_custom_call.1} parent=1 // pred_check_branch
      %9 = sbr.rel (0) target = $region5
    $region4: #{tpu_custom_call.1} parent=1 // pred_region
      %s11 = ssub.s32 128, 128
      %12 = vsyncadd [#allocation3], %s11
      %s14 = sshll.u32 [#allocation2], 4
      %s15 = int_to_ptr.vmem [resolvable:$true] %s14
      %17 = dma.hbm_to_vmem [thread:$0]  %s0, 128, %s15, [#allocation3]
    $region5: #{tpu_custom_call.1} parent=1 // pred_fallthru
      _
    // Predicated region
    $region6: #{tpu_custom_call.1} parent=1 // pred_check
      _
    $region7: #{tpu_custom_call.1} parent=1 // pred_check_branch
      %19 = sbr.rel (0) target = $region9
    $region8: #{tpu_custom_call.1} parent=1 // pred_region
      %20 = dma.done [#allocation3], 128
    $region9: #{tpu_custom_call.1} parent=1 // pred_fallthru
      _
    %v21 = vld [vmem:[#allocation2] sm:$0xff]
    %22 = vrot.lane.b32.xlu0 %v21, 1
    %v23 = vpop.permute.xlu0 %22
    %24 = vst [vmem:[#allocation5] sm:$0xff] %v23
    // Predicated region
    $region10: #{tpu_custom_call.1} parent=1 // pred_check
      _
    $region11: #{tpu_custom_call.1} parent=1 // pred_check_branch
      %26 = sbr.rel (0) target = $region13
    $region12: #{tpu_custom_call.1} parent=1 // pred_region
      %s28 = ssub.s32 128, 128
      %29 = vsyncadd [#allocation4], %s28
      %s31 = sshll.u32 [#allocation5], 4
      %s32 = int_to_ptr.vmem [resolvable:$true] %s31
      %34 = dma.vmem_to_hbm [thread:$0]  %s32, 128, %s1, [#allocation4]
    $region13: #{tpu_custom_call.1} parent=1 // pred_fallthru
      _
    // Predicated region
    $region14: #{tpu_custom_call.1} parent=1 // pred_check
      _
    $region15: #{tpu_custom_call.1} parent=1 // pred_check_branch
      %36 = sbr.rel (0) target = $region17
    $region16: #{tpu_custom_call.1} parent=1 // pred_region
      %37 = dma.done [#allocation4], 128
    $region17: #{tpu_custom_call.1} parent=1 // pred_fallthru
      _
    %38 = vsyncpa [#allocation3], 1
    %39 = vsyncpa [#allocation4], 1

</llo_original>
